<compile_context>
chip_gen: v7x
topology: tpu7x:2x2x1
jax: 0.10.0
libtpu: 0.0.40
codegen_flags: <defaults>
</compile_context>

<pallas_src>
import functools
import math

import jax
import jax.numpy as jnp
from jax.experimental import pallas as pl
from jax.experimental.pallas import tpu as pltpu


def _round_up(n, m):
    return ((n + m - 1) // m) * m


# ---------------------------------------------------------------------------
# Tiled linear (matmul + bias + optional ReLU) kernel
# ---------------------------------------------------------------------------

def _matmul_kernel(x_ref, w_ref, b_ref, o_ref, acc_ref, *, activation):
    @pl.when(pl.program_id(2) == 0)
    def _():
        acc_ref[...] = jnp.zeros_like(acc_ref)

    # operands stay in their storage dtype (bf16-friendly); accumulate in f32 on the MXU
    acc_ref[...] += jnp.dot(x_ref[...], w_ref[...], preferred_element_type=jnp.float32)

    @pl.when(pl.program_id(2) == pl.num_programs(2) - 1)
    def _():
        y = acc_ref[...] + b_ref[...].astype(jnp.float32)
        if activation == "relu":
            y = jnp.maximum(y, 0.0)
        o_ref[...] = y.astype(o_ref.dtype)


def linear(x2d, w, b, activation=None, *, tm=256, tn=256, tk=512):
    """x2d: (M, K), w: (K, N), b: (N,) -> (M, N). Tiled, K-accumulating, megacore-parallel."""
    M, K = x2d.shape
    N = w.shape[1]
    tm = min(tm, _round_up(M, 8))
    tn = min(tn, _round_up(N, 128))
    tk = min(tk, _round_up(K, 128))
    M_p, N_p, K_p = _round_up(M, tm), _round_up(N, tn), _round_up(K, tk)

    x_p = jnp.pad(x2d, ((0, M_p - M), (0, K_p - K))) if (M_p, K_p) != (M, K) else x2d
    w_p = jnp.pad(w, ((0, K_p - K), (0, N_p - N))) if (K_p, N_p) != (K, N) else w
    b_p = (jnp.pad(b, (0, N_p - N)) if N_p != N else b).reshape(1, N_p)

    out = pl.pallas_call(
        functools.partial(_matmul_kernel, activation=activation),
        out_shape=jax.ShapeDtypeStruct((M_p, N_p), x2d.dtype),
        grid=(M_p // tm, N_p // tn, K_p // tk),
        in_specs=[
            pl.BlockSpec((tm, tk), lambda i, j, k: (i, k)),
            pl.BlockSpec((tk, tn), lambda i, j, k: (k, j)),
            pl.BlockSpec((1, tn), lambda i, j, k: (0, j)),
        ],
        out_specs=pl.BlockSpec((tm, tn), lambda i, j, k: (i, j)),
        scratch_shapes=[pltpu.VMEM((tm, tn), jnp.float32)],
        compiler_params=pltpu.CompilerParams(
            dimension_semantics=("parallel", "parallel", "arbitrary"),
            vmem_limit_bytes=32 * 1024 * 1024,   # fits v7x's 64 MiB VMEM with big margin
        ),
    )(x_p, w_p, b_p)
    if (M_p, N_p) != (M, N):
        out = out[:M, :N]
    return out


# ---------------------------------------------------------------------------
# LayerNorm (torch-style, unbiased std, eps added to std) kernels
# ---------------------------------------------------------------------------

def _layernorm_math(x32, g, b, eps):
    d = x32.shape[-1]
    mean = jnp.mean(x32, axis=-1, keepdims=True)
    var = jnp.sum((x32 - mean) ** 2, axis=-1, keepdims=True) * (1.0 / (d - 1))
    std = jnp.sqrt(var)
    return g * (x32 - mean) / (std + eps) + b


def _layernorm_kernel(x_ref, g_ref, b_ref, o_ref, *, eps):
    x = x_ref[...].astype(jnp.float32)
    o_ref[...] = _layernorm_math(x, g_ref[...], b_ref[...], eps).astype(o_ref.dtype)


def layer_norm(x2d, gamma, beta, eps=1e-6, *, tm=256):
    M, D = x2d.shape
    tm = min(tm, _round_up(M, 8))
    M_p = _round_up(M, tm)
    x_p = jnp.pad(x2d, ((0, M_p - M), (0, 0))) if M_p != M else x2d
    out = pl.pallas_call(
        functools.partial(_layernorm_kernel, eps=eps),
        out_shape=jax.ShapeDtypeStruct((M_p, D), x2d.dtype),
        grid=(M_p // tm,),
        in_specs=[
            pl.BlockSpec((tm, D), lambda i: (i, 0)),
            pl.BlockSpec((1, D), lambda i: (0, 0)),
            pl.BlockSpec((1, D), lambda i: (0, 0)),
        ],
        out_specs=pl.BlockSpec((tm, D), lambda i: (i, 0)),
        compiler_params=pltpu.CompilerParams(dimension_semantics=("parallel",)),
    )(x_p, gamma.reshape(1, D), beta.reshape(1, D))
    return out[:M] if M_p != M else out


def _add_layernorm_kernel(x_ref, d_ref, g_ref, b_ref, s_ref, n_ref, *, eps):
    s32 = x_ref[...].astype(jnp.float32) + d_ref[...].astype(jnp.float32)
    s_ref[...] = s32.astype(s_ref.dtype)
    n_ref[...] = _layernorm_math(s32, g_ref[...], b_ref[...], eps).astype(n_ref.dtype)


def add_layer_norm(x2d, delta2d, gamma, beta, eps=1e-6, *, tm=256):
    """Fused residual add + LayerNorm: returns (x + delta, LN(x + delta))."""
    M, D = x2d.shape
    tm = min(tm, _round_up(M, 8))
    M_p = _round_up(M, tm)
    pad = lambda a: jnp.pad(a, ((0, M_p - M), (0, 0))) if M_p != M else a
    spec = pl.BlockSpec((tm, D), lambda i: (i, 0))
    s, n = pl.pallas_call(
        functools.partial(_add_layernorm_kernel, eps=eps),
        out_shape=(jax.ShapeDtypeStruct((M_p, D), x2d.dtype),
                   jax.ShapeDtypeStruct((M_p, D), x2d.dtype)),
        grid=(M_p // tm,),
        in_specs=[
            spec,
            spec,
            pl.BlockSpec((1, D), lambda i: (0, 0)),
            pl.BlockSpec((1, D), lambda i: (0, 0)),
        ],
        out_specs=[spec, spec],
        compiler_params=pltpu.CompilerParams(dimension_semantics=("parallel",)),
    )(pad(x2d), pad(delta2d), gamma.reshape(1, D), beta.reshape(1, D))
    if M_p != M:
        s, n = s[:M], n[:M]
    return s, n


# ---------------------------------------------------------------------------
# Attention kernel: all heads of one batch row per grid step, compact int8 mask
# ---------------------------------------------------------------------------

def _attention_kernel(q_ref, k_ref, v_ref, m_ref, o_ref, *, scale):
    q = q_ref[0] * scale                       # (h, Sq, dk) -- fold 1/sqrt(dk) into q
    k = k_ref[0]                               # (h, Sk, dk)
    v = v_ref[0]                               # (h, Sk, dk)
    mask = m_ref[0]                            # (Sq, Sk) int8, shared across heads
    scores = jnp.einsum("hqd,hkd->hqk", q, k, preferred_element_type=jnp.float32)
    scores = jnp.where(mask[None, :, :] != 0, scores, jnp.float32(-1e9))
    scores = scores - jnp.max(scores, axis=-1, keepdims=True)
    p = jnp.exp(scores)
    p = p * pl.reciprocal(jnp.sum(p, axis=-1, keepdims=True), approx=True)
    out = jnp.einsum("hqk,hkd->hqd", p.astype(v.dtype), v,
                     preferred_element_type=jnp.float32)
    o_ref[0] = out.astype(o_ref.dtype)


def attention(q, k, v, mask_i8):
    """q: (B, h, Sq, dk), k/v: (B, h, Sk, dk), mask_i8: (B, Sq, Sk) -> (B, h, Sq, dk)."""
    # TODO(synk): for long sequences tile Sk with an online-softmax (flash) accumulator.
    B, H, Sq, dk = q.shape
    Sk = k.shape[2]
    kern = functools.partial(_attention_kernel, scale=1.0 / math.sqrt(dk))
    return pl.pallas_call(
        kern,
        out_shape=jax.ShapeDtypeStruct((B, H, Sq, dk), q.dtype),
        grid=(B,),
        in_specs=[
            pl.BlockSpec((1, H, Sq, dk), lambda b: (b, 0, 0, 0)),
            pl.BlockSpec((1, H, Sk, dk), lambda b: (b, 0, 0, 0)),
            pl.BlockSpec((1, H, Sk, dk), lambda b: (b, 0, 0, 0)),
            pl.BlockSpec((1, Sq, Sk), lambda b: (b, 0, 0)),
        ],
        out_specs=pl.BlockSpec((1, H, Sq, dk), lambda b: (b, 0, 0, 0)),
        compiler_params=pltpu.CompilerParams(dimension_semantics=("parallel",)),
    )(q, k, v, mask_i8)


# ---------------------------------------------------------------------------
# Model glue (plain JAX around the Pallas kernels)
# ---------------------------------------------------------------------------

def multi_head_attention(p, q_in, k_in, v_in, mask, h):
    B, Sq, D = q_in.shape
    Sk = k_in.shape[1]
    d_k = D // h

    if (q_in is k_in) and (k_in is v_in):
        # Fused QKV projection: one (D, 3D) matmul over x.
        w = jnp.concatenate([p["wq"], p["wk"], p["wv"]], axis=1)
        b = jnp.concatenate([p["bq"], p["bk"], p["bv"]])
        qkv = linear(q_in.reshape(-1, D), w, b).reshape(B, Sq, 3, h, d_k)
        qkv = jnp.transpose(qkv, (2, 0, 3, 1, 4))          # (3, B, h, Sq, d_k)
        q, k, v = qkv[0], qkv[1], qkv[2]
    elif k_in is v_in:
        # Cross-attention: separate Q, fused KV projection over memory.
        q = linear(q_in.reshape(-1, D), p["wq"], p["bq"]).reshape(B, Sq, h, d_k)
        q = jnp.transpose(q, (0, 2, 1, 3))
        w_kv = jnp.concatenate([p["wk"], p["wv"]], axis=1)
        b_kv = jnp.concatenate([p["bk"], p["bv"]])
        kv = linear(k_in.reshape(-1, D), w_kv, b_kv).reshape(B, Sk, 2, h, d_k)
        kv = jnp.transpose(kv, (2, 0, 3, 1, 4))             # (2, B, h, Sk, d_k)
        k, v = kv[0], kv[1]
    else:  # fully general fallback
        def proj(x, w_, b_, S):
            y = linear(x.reshape(-1, D), w_, b_).reshape(B, S, h, d_k)
            return jnp.transpose(y, (0, 2, 1, 3))
        q = proj(q_in, p["wq"], p["bq"], Sq)
        k = proj(k_in, p["wk"], p["bk"], Sk)
        v = proj(v_in, p["wv"], p["bv"], Sk)

    # Compact per-batch mask: (B, Sq, Sk) int8 (broadcast over heads inside the kernel).
    mask3 = (jnp.broadcast_to(mask[:, 0], (B, Sq, Sk)) != 0).astype(jnp.int8)

    out = attention(q, k, v, mask3)                         # (B, h, Sq, d_k)
    out = jnp.transpose(out, (0, 2, 1, 3)).reshape(B, Sq, D)
    return linear(out.reshape(-1, D), p["wo"], p["bo"]).reshape(B, Sq, D)


def feed_forward(p, x):
    B, S, D = x.shape
    h1 = linear(x.reshape(-1, D), p["w1"], p["b1"], activation="relu")
    h2 = linear(h1, p["w2"], p["b2"])
    return h2.reshape(B, S, D)


def _sublayer_chain(x, sublayers, final_norm):
    """Encoder/Decoder stack: for each (norm_i, fn_i): xn = LN_i(x); x = x + fn_i(xn);
    finally return final_norm(x).  Each residual add is fused with the next LayerNorm."""
    B, S, D = x.shape
    x2 = x.reshape(-1, D)

    norm0, fn0 = sublayers[0]
    xn = layer_norm(x2, norm0["g"], norm0["b"]).reshape(B, S, D)
    delta = fn0(xn).reshape(-1, D)

    for norm_p, fn in sublayers[1:]:
        x2, xn2 = add_layer_norm(x2, delta, norm_p["g"], norm_p["b"])
        delta = fn(xn2.reshape(B, S, D)).reshape(-1, D)

    _, out_n = add_layer_norm(x2, delta, final_norm["g"], final_norm["b"])
    return out_n.reshape(B, S, D)


def embed(p, tokens, d_model, pe):
    # Embeddings: lut(x) * sqrt(d_model); PositionalEncoding: + pe[:S]; dropout = identity
    x = jnp.take(p["lut"], tokens, axis=0) * math.sqrt(d_model)
    return x + pe[None, : tokens.shape[1], :]


def encoder(params, x, src_mask, h):
    subs = []
    for lp in params["layers"]:
        subs.append((lp["norm1"],
                     lambda y, p=lp["self_attn"]: multi_head_attention(p, y, y, y, src_mask, h)))
        subs.append((lp["norm2"], lambda y, p=lp["ff"]: feed_forward(p, y)))
    return _sublayer_chain(x, subs, params["norm"])


def decoder(params, x, memory, src_mask, tgt_mask, h):
    subs = []
    for lp in params["layers"]:
        subs.append((lp["norm1"],
                     lambda y, p=lp["self_attn"]: multi_head_attention(p, y, y, y, tgt_mask, h)))
        subs.append((lp["norm2"],
                     lambda y, p=lp["src_attn"]: multi_head_attention(p, y, memory, memory, src_mask, h)))
        subs.append((lp["norm3"], lambda y, p=lp["ff"]: feed_forward(p, y)))
    return _sublayer_chain(x, subs, params["norm"])


def encoder_decoder_forward(params, src, tgt, src_mask, tgt_mask, *, d_model, h):
    # EncoderDecoder.forward: decode(encode(src, src_mask), src_mask, tgt, tgt_mask)
    src_x = embed(params["src_embed"], src, d_model, params["pe"])
    memory = encoder(params["encoder"], src_x, src_mask, h)
    tgt_x = embed(params["tgt_embed"], tgt, d_model, params["pe"])
    return decoder(params["decoder"], tgt_x, memory, src_mask, tgt_mask, h)
    # NOTE: Generator (final log-softmax projection) is not invoked by forward().


# ---------------------------------------------------------------------------
# Deterministic parameter construction
# ---------------------------------------------------------------------------

def _make_pe(max_len, d_model):
    pos = jnp.arange(max_len, dtype=jnp.float32)[:, None]
    div = jnp.exp(jnp.arange(0, d_model, 2, dtype=jnp.float32) * (-math.log(10000.0) / d_model))
    pe = jnp.zeros((max_len, d_model), jnp.float32)
    pe = pe.at[:, 0::2].set(jnp.sin(pos * div))
    pe = pe.at[:, 1::2].set(jnp.cos(pos * div))
    return pe


def _linear_params(key, d_in, d_out, scale=0.1):
    kw, kb = jax.random.split(key)
    return (scale * jax.random.normal(kw, (d_in, d_out), jnp.float32),
            scale * jax.random.normal(kb, (d_out,), jnp.float32))


def make_params(key, *, n_layers, d_model, d_ff, h, src_vocab, tgt_vocab, max_len):
    keys = iter(jax.random.split(key, 256))

    def attn_params():
        p = {}
        for nm in ("q", "k", "v", "o"):
            w, b = _linear_params(next(keys), d_model, d_model)
            p["w" + nm], p["b" + nm] = w, b
        return p

    def ff_params():
        w1, b1 = _linear_params(next(keys), d_model, d_ff)
        w2, b2 = _linear_params(next(keys), d_ff, d_model)
        return {"w1": w1, "b1": b1, "w2": w2, "b2": b2}

    def norm_params():
        return {"g": jnp.ones((d_model,), jnp.float32), "b": jnp.zeros((d_model,), jnp.float32)}

    enc_layers = [{"self_attn": attn_params(), "ff": ff_params(),
                   "norm1": norm_params(), "norm2": norm_params()} for _ in range(n_layers)]
    dec_layers = [{"self_attn": attn_params(), "src_attn": attn_params(), "ff": ff_params(),
                   "norm1": norm_params(), "norm2": norm_params(), "norm3": norm_params()}
                  for _ in range(n_layers)]

    return {
        "src_embed": {"lut": 0.1 * jax.random.normal(next(keys), (src_vocab, d_model), jnp.float32)},
        "tgt_embed": {"lut": 0.1 * jax.random.normal(next(keys), (tgt_vocab, d_model), jnp.float32)},
        "pe": _make_pe(max_len, d_model),
        "encoder": {"layers": enc_layers, "norm": norm_params()},
        "decoder": {"layers": dec_layers, "norm": norm_params()},
    }


# ---------------------------------------------------------------------------

if __name__ == "__main__":
    B, S_SRC, S_TGT = 2, 8, 8
    D_MODEL, D_FF, H, N_LAYERS = 32, 64, 4, 2   # production configs should use 128-multiples
    SRC_VOCAB = TGT_VOCAB = 16

    key = jax.random.PRNGKey(0)
    k_par, k_src, k_tgt = jax.random.split(key, 3)

    params = make_params(k_par, n_layers=N_LAYERS, d_model=D_MODEL, d_ff=D_FF, h=H,
                         src_vocab=SRC_VOCAB, tgt_vocab=TGT_VOCAB, max_len=64)

    src = jax.random.randint(k_src, (B, S_SRC), 0, SRC_VOCAB, dtype=jnp.int32)
    tgt = jax.random.randint(k_tgt, (B, S_TGT), 0, TGT_VOCAB, dtype=jnp.int32)

    # src_mask: all positions valid; tgt_mask: causal (subsequent) mask.
    src_mask = jnp.ones((B, 1, 1, S_SRC), jnp.float32)
    tgt_mask = jnp.tril(jnp.ones((S_TGT, S_TGT), jnp.float32))[None, None, :, :]
    tgt_mask = jnp.broadcast_to(tgt_mask, (B, 1, S_TGT, S_TGT))

    out = encoder_decoder_forward(params, src, tgt, src_mask, tgt_mask, d_model=D_MODEL, h=H)
    out = jax.block_until_ready(out)
    assert out.shape == (B, S_TGT, D_MODEL), out.shape
    assert bool(jnp.all(jnp.isfinite(out)))
    print("KERNEL_OK")
</pallas_src>

<mosaic_0001>
module attributes {stable_mosaic.version = 11 : i64} {
  func.func @_layernorm_kernel(%arg0: i32, %arg1: memref<16x32xf32, #tpu.memory_space<vmem>>, %arg2: memref<1x32xf32, #tpu.memory_space<vmem>>, %arg3: memref<1x32xf32, #tpu.memory_space<vmem>>, %arg4: memref<16x32xf32, #tpu.memory_space<vmem>>) attributes {dimension_semantics = [#tpu.dimension_semantics<parallel>], iteration_bounds = array<i64: 1>, scalar_prefetch = 0 : i64, scratch_operands = 0 : i64, tpu.core_type = #tpu.core_type<tc>, window_params = [{transform_indices = @transform_0, window_bounds = array<i64: 16, 32>}, {pipeline_mode = #tpu.pipeline_mode<synchronous>, transform_indices = @transform_1, window_bounds = array<i64: 1, 32>}, {pipeline_mode = #tpu.pipeline_mode<synchronous>, transform_indices = @transform_2, window_bounds = array<i64: 1, 32>}, {transform_indices = @transform_3, window_bounds = array<i64: 16, 32>}]} {
    %c0 = arith.constant 0 : index
    %c0_0 = arith.constant 0 : index
    %0 = vector.load %arg1[%c0, %c0_0] : memref<16x32xf32, #tpu.memory_space<vmem>>, vector<16x32xf32>
    %c0_1 = arith.constant 0 : index
    %c0_2 = arith.constant 0 : index
    %1 = vector.load %arg2[%c0_1, %c0_2] : memref<1x32xf32, #tpu.memory_space<vmem>>, vector<1x32xf32>
    %c0_3 = arith.constant 0 : index
    %c0_4 = arith.constant 0 : index
    %2 = vector.load %arg3[%c0_3, %c0_4] : memref<1x32xf32, #tpu.memory_space<vmem>>, vector<1x32xf32>
    %cst = arith.constant dense<0.000000e+00> : vector<16xf32>
    %3 = vector.multi_reduction <add>, %0, %cst [1] : vector<16x32xf32> to vector<16xf32>
    %4 = vector.shape_cast %3 : vector<16xf32> to vector<16x1xf32>
    %cst_5 = arith.constant 3.200000e+01 : f32
    %5 = vector.broadcast %cst_5 : f32 to vector<16x1xf32>
    %6 = arith.divf %4, %5 : vector<16x1xf32>
    %7 = vector.broadcast %6 : vector<16x1xf32> to vector<16x32xf32>
    %8 = arith.subf %0, %7 : vector<16x32xf32>
    %9 = arith.mulf %8, %8 : vector<16x32xf32>
    %cst_6 = arith.constant dense<0.000000e+00> : vector<16xf32>
    %10 = vector.multi_reduction <add>, %9, %cst_6 [1] : vector<16x32xf32> to vector<16xf32>
    %11 = vector.shape_cast %10 : vector<16xf32> to vector<16x1xf32>
    %cst_7 = arith.constant 0.0322580636 : f32
    %12 = vector.broadcast %cst_7 : f32 to vector<16x1xf32>
    %13 = arith.mulf %11, %12 : vector<16x1xf32>
    %14 = math.sqrt %13 : vector<16x1xf32>
    %15 = vector.broadcast %6 : vector<16x1xf32> to vector<16x32xf32>
    %16 = arith.subf %0, %15 : vector<16x32xf32>
    %17 = vector.broadcast %1 : vector<1x32xf32> to vector<16x32xf32>
    %18 = arith.mulf %17, %16 : vector<16x32xf32>
    %cst_8 = arith.constant 9.99999997E-7 : f32
    %19 = vector.broadcast %cst_8 : f32 to vector<16x1xf32>
    %20 = arith.addf %14, %19 : vector<16x1xf32>
    %21 = vector.broadcast %20 : vector<16x1xf32> to vector<16x32xf32>
    %22 = arith.divf %18, %21 : vector<16x32xf32>
    %23 = vector.broadcast %2 : vector<1x32xf32> to vector<16x32xf32>
    %24 = arith.addf %22, %23 : vector<16x32xf32>
    %c0_9 = arith.constant 0 : index
    %c0_10 = arith.constant 0 : index
    %25 = vector.load %arg4[%c0_9, %c0_10] : memref<16x32xf32, #tpu.memory_space<vmem>>, vector<16x32xf32>
    tpu.vector_store %arg4[%c0_9, %c0_10], %24 {strides = array<i32>} : memref<16x32xf32, #tpu.memory_space<vmem>>, vector<16x32xf32>,
    return
  }
  func.func @transform_0(%arg0: i32) -> (i32, i32) {
    %c0_i32 = arith.constant 0 : i32
    %c0_i32_0 = arith.constant 0 : i32
    return %arg0, %c0_i32 : i32, i32
  }
  func.func @transform_1(%arg0: i32) -> (i32, i32) {
    %c0_i32 = arith.constant 0 : i32
    %c0_i32_0 = arith.constant 0 : i32
    %c0_i32_1 = arith.constant 0 : i32
    return %c0_i32, %c0_i32_0 : i32, i32
  }
  func.func @transform_2(%arg0: i32) -> (i32, i32) {
    %c0_i32 = arith.constant 0 : i32
    %c0_i32_0 = arith.constant 0 : i32
    %c0_i32_1 = arith.constant 0 : i32
    return %c0_i32, %c0_i32_0 : i32, i32
  }
  func.func @transform_3(%arg0: i32) -> (i32, i32) {
    %c0_i32 = arith.constant 0 : i32
    %c0_i32_0 = arith.constant 0 : i32
    return %arg0, %c0_i32 : i32, i32
  }
}

</mosaic_0001>

<llo_original>
// kernel: tpu_custom_call.1
$region0: #{tpu_custom_call.1}
  #allocation0 [shape = 'u32[]', space=smem, size = 0x4, offset = 0x4, fixed_abs, tag = 'smem constant byte address 0x4 - core index']
  #allocation1 [shape = 'u32[144,128]{1,0:T(1,128)}', space=vmem, size = 0x12000, scoped, tag = 'internal scratch']
  %s0 = inlined_call_operand.hbm [shape: f32[16,32], index: 0, kind: input, shape index: {}]
  %s1 = inlined_call_operand.vmem [shape: f32[1,32], index: 1, kind: input, shape index: {}]
  %s2 = inlined_call_operand.vmem [shape: f32[1,32], index: 2, kind: input, shape index: {}]
  %s3 = inlined_call_operand.hbm [shape: f32[16,32], index: 3, kind: output, shape index: {}]
  %s4 = sld [smem:[#allocation0]]
  $region26: #{tpu_custom_call.1} parent=0
    _
  %s6 = ssub.s32 1, %s4
  %s7 = scalar_select 0, %s6, %s4
  $region1: #{tpu_custom_call.1} parent=0
    #allocation2 [shape = 'u8[8192]{0}', space=vmem, size = 0x2000, scoped, tag = 'input window, operand 0, single buffered']
    #allocation3 [shape = 's32[1]{0}', space=sflag, size = 0x4, scoped, tag = 'scoped memory for tpu_custom_call.1']
    #allocation4 [shape = 's32[1]{0}', space=sflag, size = 0x4, scoped, tag = 'scoped memory for tpu_custom_call.1']
    #allocation5 [shape = 'u8[8192]{0}', space=vmem, size = 0x2000, scoped, tag = 'output window, operand 0, single buffered']
    %8 = vsyncpa [#allocation3], 0
    %9 = vsyncpa [#allocation4], 0
    // Predicated region
    $region2: #{tpu_custom_call.1} parent=1 // pred_check
      _
    $region3: #{tpu_custom_call.1} parent=1 // pred_check_branch
      %11 = sbr.rel (0) target = $region5
    $region4: #{tpu_custom_call.1} parent=1 // pred_region
      %s13 = ssub.s32 256, 256
      %14 = vsyncadd [#allocation3], %s13
      %s15 = sshll.u32 [#allocation2], 4
      %s16 = int_to_ptr.vmem [resolvable:$true] %s15
      %21 = dma.hbm_to_vmem [thread:$0]  %s0, 256, %s16, [#allocation3], 128, 128, 8
    $region5: #{tpu_custom_call.1} parent=1 // pred_fallthru
      _
    // Predicated region
    $region6: #{tpu_custom_call.1} parent=1 // pred_check
      _
    $region7: #{tpu_custom_call.1} parent=1 // pred_check_branch
      %23 = sbr.rel (0) target = $region9
    $region8: #{tpu_custom_call.1} parent=1 // pred_region
      _
    $region9: #{tpu_custom_call.1} parent=1 // pred_fallthru
      _
    // Predicated region
    $region10: #{tpu_custom_call.1} parent=1 // pred_check
      _
    $region11: #{tpu_custom_call.1} parent=1 // pred_check_branch
      %25 = sbr.rel (0) target = $region13
    $region12: #{tpu_custom_call.1} parent=1 // pred_region
      _
    $region13: #{tpu_custom_call.1} parent=1 // pred_fallthru
      _
    // Predicated region
    $region14: #{tpu_custom_call.1} parent=1 // pred_check
      _
    $region15: #{tpu_custom_call.1} parent=1 // pred_check_branch
      %27 = sbr.rel (0) target = $region17
    $region16: #{tpu_custom_call.1} parent=1 // pred_region
      %28 = dma.done [#allocation3], 256
    $region17: #{tpu_custom_call.1} parent=1 // pred_fallthru
      _
    %v29 = vld [vmem:[#allocation2] sm:$0xff]
    %v30 = vld [vmem:[#allocation2 + $0x8] sm:$0xff]
    %v31 = vld [vmem:[%s1] sm:$0x1]
    %v32 = vld [vmem:[%s2] sm:$0x1]
    %vm33 = vcmask 261120
    %v34 = vsel %vm33, %v29, 0.0
    %35 = vadd.xlane.f32.xlu0 %v34
    %v36 = vpop.xlane.xlu0 %35
    %v37 = vsel %vm33, %v30, 0.0
    %38 = vadd.xlane.f32.xlu0 %v37
    %v39 = vpop.xlane.xlu0 %38
    %v40 = vrcp.pop 32.0
    %v41 = vmul.f32 %v36, %v40
    %v42 = vmul.f32 %v39, %v40
    %v43 = vsub.f32 %v29, %v41
    %v44 = vsub.f32 %v30, %v42
    %v45 = vmul.f32 %v43, %v43
    %v46 = vmul.f32 %v44, %v44
    %v47 = vsel %vm33, %v45, 0.0
    %48 = vadd.xlane.f32.xlu0 %v47
    %v49 = vpop.xlane.xlu0 %48
    %v50 = vsel %vm33, %v46, 0.0
    %51 = vadd.xlane.f32.xlu0 %v50
    %v52 = vpop.xlane.xlu0 %51
    %v53 = vmul.f32 %v49, 0.032258064
    %v54 = vmul.f32 %v52, 0.032258064
    %v55 = vrsqrt.pop %v53
    %v56 = vmul.f32 %v53, %v55
    %vm57 = vcmp.eq.f32.partialorder %v53, inf
    %v58 = vsel %vm57, %v53, %v56
    %vm59 = vcmp.eq.f32.partialorder %v53, 0.0
    %v60 = vand.u32 %v53, 2147483648
    %v61 = vsel %vm59, %v60, %v58
    %v62 = vrsqrt.pop %v54
    %v63 = vmul.f32 %v54, %v62
    %vm64 = vcmp.eq.f32.partialorder %v54, inf
    %v65 = vsel %vm64, %v54, %v63
    %vm66 = vcmp.eq.f32.partialorder %v54, 0.0
    %v67 = vand.u32 %v54, 2147483648
    %v68 = vsel %vm66, %v67, %v65
    %v70 = vlaneseq
    %v71 = vshrl.u32 %v70, 7
    %v72 = vsub.s32 0, %v71
    %v73 = vrot.slane %v31, %v72
    %v75 = vmul.f32 %v73, %v43
    %v76 = vmul.f32 %v73, %v44
    %v77 = vadd.f32 %v61, 1e-06
    %v78 = vadd.f32 %v68, 1e-06
    %v79 = vrcp.pop %v77
    %v80 = vmul.f32 %v75, %v79
    %v81 = vrcp.pop %v78
    %v82 = vmul.f32 %v76, %v81
    %v84 = vlaneseq
    %v85 = vshrl.u32 %v84, 7
    %v86 = vsub.s32 0, %v85
    %v87 = vrot.slane %v32, %v86
    %v89 = vadd.f32 %v80, %v87
    %v90 = vadd.f32 %v82, %v87
    %91 = vst.msk [vmem:[#allocation5] sm:$0xff] %vm33, %v89
    %92 = vst.msk [vmem:[#allocation5 + $0x8] sm:$0xff] %vm33, %v90
    // Predicated region
    $region18: #{tpu_custom_call.1} parent=1 // pred_check
      _
    $region19: #{tpu_custom_call.1} parent=1 // pred_check_branch
      %94 = sbr.rel (0) target = $region21
    $region20: #{tpu_custom_call.1} parent=1 // pred_region
      %s96 = ssub.s32 256, 256
      %97 = vsyncadd [#allocation4], %s96
      %s98 = sshll.u32 [#allocation5], 4
      %s99 = int_to_ptr.vmem [resolvable:$true] %s98
      %104 = dma.vmem_to_hbm [thread:$0]  %s99, 256, %s3, [#allocation4], 128, 128, 8
    $region21: #{tpu_custom_call.1} parent=1 // pred_fallthru
      _
    // Predicated region
    $region22: #{tpu_custom_call.1} parent=1 // pred_check
      _
    $region23: #{tpu_custom_call.1} parent=1 // pred_check_branch
      %106 = sbr.rel (0) target = $region25
    $region24: #{tpu_custom_call.1} parent=1 // pred_region
      %107 = dma.done [#allocation4], 256
    $region25: #{tpu_custom_call.1} parent=1 // pred_fallthru
      _
    %108 = vsyncpa [#allocation3], 1
    %109 = vsyncpa [#allocation4], 1

</llo_original>
